<compile_context>
chip_gen: v6e
topology: v6e:2x2x1
jax: 0.10.0
libtpu: 0.0.40
codegen_flags: <defaults>
</compile_context>

<pallas_src>
import functools

import jax
import jax.numpy as jnp
from jax import lax
from jax.experimental import pallas as pl
from jax.experimental.pallas import tpu as pltpu

DILATIONS = (1, 2, 4)


# --------------------------- kernel: multi-scale depthwise dilated conv -------------
def _msconv_kernel(x_ref, w_ref, o_ref, *, tap_offsets, base, chunk):
    """Multi-scale depthwise dilated 3x3 conv, channels-last flat layout.

    x_ref: (L, Ct)  zero-haloed input, flattened row-major over padded (H, W).
                    lanes = channels, sublanes = flattened padded spatial index.
    w_ref: (T, Ct)  per-channel tap weights, T = 9 * n_dilations, 1/n_dil pre-folded.
    o_ref: (N, Ct)  conv output over all padded columns, N = H * Wp.
    """
    n_out, _ = o_ref.shape
    n_taps = len(tap_offsets)

    # Hoist per-tap weight rows out of the chunk loop (JAX does not CSE broadcasts);
    # each (1, Ct) operand is sublane-replicated by Mosaic, so the broadcast in the
    # multiply costs no extra full-slab ops.
    w_rows = [w_ref[t:t + 1, :] for t in range(n_taps)]

    def compute_chunk(r0, size):
        # Register-resident accumulator; every tap is a sublane-offset load from VMEM
        # (no lane shifts). Exactly one store per chunk.
        acc = w_rows[0] * x_ref[pl.ds(base + tap_offsets[0] + r0, size), :]
        for t in range(1, n_taps):
            acc = acc + w_rows[t] * x_ref[pl.ds(base + tap_offsets[t] + r0, size), :]
        o_ref[pl.ds(r0, size), :] = acc

    n_full = n_out // chunk
    if n_full > 0:
        def chunk_body(ci, carry):
            compute_chunk(pl.multiple_of(ci * chunk, 8), chunk)
            return carry
        lax.fori_loop(0, n_full, chunk_body, 0)

    rem = n_out - n_full * chunk
    if rem > 0:                                  # static tail chunk
        compute_chunk(n_full * chunk, rem)


# --------------------------- wrapper -------------------------------------------------
def multi_scale_dilated_conv(x, dw_list, dilations=DILATIONS,
                             compute_dtype=jnp.float32, chunk=64):
    """x: (B, C, H, W); dw_list: one depthwise weight (C, 1, 3, 3) per dilation.

    compute_dtype=jnp.bfloat16 is a valid fast path on v6e/v7x (2x VALU throughput,
    half the DMA bytes); keep float32 on v5e (no bf16 VPU).
    """
    B, C, H, W = x.shape
    n_dil = len(dilations)
    n_taps = 9 * n_dil
    pad = max(dilations)

    Wp = W + 2 * pad                  # padded row width (columns computed per row)
    rows = H + 2 * (pad + 1)          # zero halo rows + 1 guard row top/bottom
    L = rows * Wp                     # flattened padded length (sublane axis)
    N = H * Wp                        # outputs per channel (pad columns dropped later)
    base = (pad + 1) * Wp             # flat input index of output position (y=0, x'=0)
    chunk = max(8, (chunk // 8) * 8)  # sublane-aligned accumulator chunk

    # tap order: (dilation, ky, kx) — must match the weight reshape below.
    tap_offsets = tuple(ky * d * Wp + kx * d
                        for d in dilations for ky in (-1, 0, 1) for kx in (-1, 0, 1))
    # Every tap read stays inside [0, L): the +1 guard rows absorb the worst-case
    # (ky=-1, kx=-1, d=pad) underflow at the (discarded) pad columns. Reads that cross a
    # row boundary only happen for pad-column outputs, which the wrapper slices off.
    assert base + min(tap_offsets) >= 0 and base + max(tap_offsets) + N <= L

    # Channel tiling: lanes carry channels. 128-wide tiles when C allows, else full C.
    Ct = 128 if C % 128 == 0 else C
    n_ct = C // Ct

    # channels-last + ONE zero pad (halo + guard rows) + flatten spatial.
    xt = jnp.transpose(x, (0, 2, 3, 1)).astype(compute_dtype)          # (B, H, W, C)
    xt = jnp.pad(xt, ((0, 0), (pad + 1, pad + 1), (pad, pad), (0, 0))) # (B, rows, Wp, C)
    x_flat = xt.reshape(B, L, C)

    # depthwise weights -> (27, C); fold the 1/num_scales branch average into the taps.
    w = jnp.stack([wd[:, 0] for wd in dw_list], axis=0)                # (n_dil, C, 3, 3)
    w = jnp.transpose(w, (0, 2, 3, 1)).reshape(n_taps, C)              # (27, C)
    w = (w / n_dil).astype(compute_dtype)

    itemsize = jnp.dtype(compute_dtype).itemsize
    vmem_need = (2 * (L + N) * Ct + 4 * n_taps * Ct) * itemsize        # dbl-buffered tiles
    vmem_limit = int(min(max(int(vmem_need * 1.25) + (1 << 20), 16 << 20), 100 << 20))

    out_flat = pl.pallas_call(
        functools.partial(_msconv_kernel, tap_offsets=tap_offsets, base=base, chunk=chunk),
        out_shape=jax.ShapeDtypeStruct((B, N, C), compute_dtype),
        grid=(B, n_ct),
        in_specs=[
            pl.BlockSpec((None, L, Ct), lambda b, c: (b, 0, c)),   # per (batch, chan-tile)
            pl.BlockSpec((n_taps, Ct), lambda b, c: (0, c)),       # grid-invariant taps
        ],
        out_specs=pl.BlockSpec((None, N, Ct), lambda b, c: (b, 0, c)),
        compiler_params=pltpu.CompilerParams(
            dimension_semantics=("parallel", "parallel"),
            vmem_limit_bytes=vmem_limit),
    )(x_flat, w)

    # Drop the pad columns and return to NCHW — pure layout plumbing outside the kernel.
    out = out_flat.reshape(B, H, Wp, C)[:, :, pad:pad + W, :]
    return jnp.transpose(out, (0, 3, 1, 2)).astype(x.dtype)


# --------------------------- pure-JAX reference (mirrors the PyTorch forward) --------
def msconv_reference(x, dw_list, dilations=DILATIONS):
    C = x.shape[1]
    P = lax.Precision.HIGHEST
    out = None
    for d, w in zip(dilations, dw_list):
        y = lax.conv_general_dilated(
            x, w, window_strides=(1, 1), padding=((d, d), (d, d)),
            rhs_dilation=(d, d), dimension_numbers=("NCHW", "OIHW", "NCHW"),
            feature_group_count=C, precision=P)
        out = y if out is None else out + y
    return out / len(dilations)


if __name__ == "__main__":
    B, C, H, W = 2, 32, 16, 16
    key = jax.random.PRNGKey(0)
    kx_, k1, k2, k3 = jax.random.split(key, 4)
    x = jax.random.normal(kx_, (B, C, H, W), jnp.float32)
    dw = [0.2 * jax.random.normal(k, (C, 1, 3, 3), jnp.float32) for k in (k1, k2, k3)]

    out = jax.jit(multi_scale_dilated_conv)(x, dw)
    jax.block_until_ready(out)

    ref = msconv_reference(x, dw)
    jax.block_until_ready(ref)

    assert out.shape == (B, C, H, W)
    max_err = float(jnp.max(jnp.abs(out - ref)))
    if max_err < 1e-3:
        print("KERNEL_OK")
    else:
        print(f"MISMATCH max_abs_err={max_err:.3e}")
</pallas_src>

<mosaic_0001>
module attributes {stable_mosaic.version = 11 : i64} {
  func.func @_msconv_kernel(%arg0: i32, %arg1: i32, %arg2: memref<1x624x32xf32, #tpu.memory_space<vmem>>, %arg3: memref<27x32xf32, #tpu.memory_space<vmem>>, %arg4: memref<1x384x32xf32, #tpu.memory_space<vmem>>) attributes {dimension_semantics = [#tpu.dimension_semantics<parallel>, #tpu.dimension_semantics<parallel>], iteration_bounds = array<i64: 2, 1>, scalar_prefetch = 0 : i64, scratch_operands = 0 : i64, tpu.core_type = #tpu.core_type<tc>, window_params = [{transform_indices = @transform_0, window_bounds = array<i64: 1, 624, 32>}, {transform_indices = @transform_1, window_bounds = array<i64: 27, 32>}, {transform_indices = @transform_2, window_bounds = array<i64: 1, 384, 32>}]} {
    %c0 = arith.constant 0 : index
    %c0_0 = arith.constant 0 : index
    %0 = vector.load %arg3[%c0, %c0_0] : memref<27x32xf32, #tpu.memory_space<vmem>>, vector<1x32xf32>
    %c1 = arith.constant 1 : index
    %c0_1 = arith.constant 0 : index
    %1 = vector.load %arg3[%c1, %c0_1] : memref<27x32xf32, #tpu.memory_space<vmem>>, vector<1x32xf32>
    %c2 = arith.constant 2 : index
    %c0_2 = arith.constant 0 : index
    %2 = vector.load %arg3[%c2, %c0_2] : memref<27x32xf32, #tpu.memory_space<vmem>>, vector<1x32xf32>
    %c3 = arith.constant 3 : index
    %c0_3 = arith.constant 0 : index
    %3 = vector.load %arg3[%c3, %c0_3] : memref<27x32xf32, #tpu.memory_space<vmem>>, vector<1x32xf32>
    %c4 = arith.constant 4 : index
    %c0_4 = arith.constant 0 : index
    %4 = vector.load %arg3[%c4, %c0_4] : memref<27x32xf32, #tpu.memory_space<vmem>>, vector<1x32xf32>
    %c5 = arith.constant 5 : index
    %c0_5 = arith.constant 0 : index
    %5 = vector.load %arg3[%c5, %c0_5] : memref<27x32xf32, #tpu.memory_space<vmem>>, vector<1x32xf32>
    %c6 = arith.constant 6 : index
    %c0_6 = arith.constant 0 : index
    %6 = vector.load %arg3[%c6, %c0_6] : memref<27x32xf32, #tpu.memory_space<vmem>>, vector<1x32xf32>
    %c7 = arith.constant 7 : index
    %c0_7 = arith.constant 0 : index
    %7 = vector.load %arg3[%c7, %c0_7] : memref<27x32xf32, #tpu.memory_space<vmem>>, vector<1x32xf32>
    %c8 = arith.constant 8 : index
    %c0_8 = arith.constant 0 : index
    %8 = vector.load %arg3[%c8, %c0_8] : memref<27x32xf32, #tpu.memory_space<vmem>>, vector<1x32xf32>
    %c9 = arith.constant 9 : index
    %c0_9 = arith.constant 0 : index
    %9 = vector.load %arg3[%c9, %c0_9] : memref<27x32xf32, #tpu.memory_space<vmem>>, vector<1x32xf32>
    %c10 = arith.constant 10 : index
    %c0_10 = arith.constant 0 : index
    %10 = vector.load %arg3[%c10, %c0_10] : memref<27x32xf32, #tpu.memory_space<vmem>>, vector<1x32xf32>
    %c11 = arith.constant 11 : index
    %c0_11 = arith.constant 0 : index
    %11 = vector.load %arg3[%c11, %c0_11] : memref<27x32xf32, #tpu.memory_space<vmem>>, vector<1x32xf32>
    %c12 = arith.constant 12 : index
    %c0_12 = arith.constant 0 : index
    %12 = vector.load %arg3[%c12, %c0_12] : memref<27x32xf32, #tpu.memory_space<vmem>>, vector<1x32xf32>
    %c13 = arith.constant 13 : index
    %c0_13 = arith.constant 0 : index
    %13 = vector.load %arg3[%c13, %c0_13] : memref<27x32xf32, #tpu.memory_space<vmem>>, vector<1x32xf32>
    %c14 = arith.constant 14 : index
    %c0_14 = arith.constant 0 : index
    %14 = vector.load %arg3[%c14, %c0_14] : memref<27x32xf32, #tpu.memory_space<vmem>>, vector<1x32xf32>
    %c15 = arith.constant 15 : index
    %c0_15 = arith.constant 0 : index
    %15 = vector.load %arg3[%c15, %c0_15] : memref<27x32xf32, #tpu.memory_space<vmem>>, vector<1x32xf32>
    %c16 = arith.constant 16 : index
    %c0_16 = arith.constant 0 : index
    %16 = vector.load %arg3[%c16, %c0_16] : memref<27x32xf32, #tpu.memory_space<vmem>>, vector<1x32xf32>
    %c17 = arith.constant 17 : index
    %c0_17 = arith.constant 0 : index
    %17 = vector.load %arg3[%c17, %c0_17] : memref<27x32xf32, #tpu.memory_space<vmem>>, vector<1x32xf32>
    %c18 = arith.constant 18 : index
    %c0_18 = arith.constant 0 : index
    %18 = vector.load %arg3[%c18, %c0_18] : memref<27x32xf32, #tpu.memory_space<vmem>>, vector<1x32xf32>
    %c19 = arith.constant 19 : index
    %c0_19 = arith.constant 0 : index
    %19 = vector.load %arg3[%c19, %c0_19] : memref<27x32xf32, #tpu.memory_space<vmem>>, vector<1x32xf32>
    %c20 = arith.constant 20 : index
    %c0_20 = arith.constant 0 : index
    %20 = vector.load %arg3[%c20, %c0_20] : memref<27x32xf32, #tpu.memory_space<vmem>>, vector<1x32xf32>
    %c21 = arith.constant 21 : index
    %c0_21 = arith.constant 0 : index
    %21 = vector.load %arg3[%c21, %c0_21] : memref<27x32xf32, #tpu.memory_space<vmem>>, vector<1x32xf32>
    %c22 = arith.constant 22 : index
    %c0_22 = arith.constant 0 : index
    %22 = vector.load %arg3[%c22, %c0_22] : memref<27x32xf32, #tpu.memory_space<vmem>>, vector<1x32xf32>
    %c23 = arith.constant 23 : index
    %c0_23 = arith.constant 0 : index
    %23 = vector.load %arg3[%c23, %c0_23] : memref<27x32xf32, #tpu.memory_space<vmem>>, vector<1x32xf32>
    %c24 = arith.constant 24 : index
    %c0_24 = arith.constant 0 : index
    %24 = vector.load %arg3[%c24, %c0_24] : memref<27x32xf32, #tpu.memory_space<vmem>>, vector<1x32xf32>
    %c25 = arith.constant 25 : index
    %c0_25 = arith.constant 0 : index
    %25 = vector.load %arg3[%c25, %c0_25] : memref<27x32xf32, #tpu.memory_space<vmem>>, vector<1x32xf32>
    %c26 = arith.constant 26 : index
    %c0_26 = arith.constant 0 : index
    %26 = vector.load %arg3[%c26, %c0_26] : memref<27x32xf32, #tpu.memory_space<vmem>>, vector<1x32xf32>
    %c0_i32 = arith.constant 0 : i32
    %c6_i32 = arith.constant 6 : i32
    %27 = arith.addi %c0_i32, %c6_i32 : i32
    %c1_i32 = arith.constant 1 : i32
    scf.for %arg5 = %c0_i32 to %27 step %c1_i32  : i32 {
      %c64_i32 = arith.constant 64 : i32
      %28 = arith.muli %arg5, %c64_i32 : i32
      %29 = tpu.assume_multiple %28, 8 : i32
      %c95_i32 = arith.constant 95 : i32
      %30 = arith.addi %c95_i32, %29 : i32
      %c0_28 = arith.constant 0 : index
      %31 = arith.index_cast %30 : i32 to index
      %c0_29 = arith.constant 0 : index
      %32 = vector.load %arg2[%c0_28, %31, %c0_29] : memref<1x624x32xf32, #tpu.memory_space<vmem>>, vector<1x64x32xf32>
      %33 = vector.shape_cast %32 : vector<1x64x32xf32> to vector<64x32xf32>
      %34 = vector.broadcast %0 : vector<1x32xf32> to vector<64x32xf32>
      %35 = arith.mulf %34, %33 : vector<64x32xf32>
      %c96_i32 = arith.constant 96 : i32
      %36 = arith.addi %c96_i32, %29 : i32
      %c0_30 = arith.constant 0 : index
      %37 = arith.index_cast %36 : i32 to index
      %c0_31 = arith.constant 0 : index
      %38 = vector.load %arg2[%c0_30, %37, %c0_31] : memref<1x624x32xf32, #tpu.memory_space<vmem>>, vector<1x64x32xf32>
      %39 = vector.shape_cast %38 : vector<1x64x32xf32> to vector<64x32xf32>
      %40 = vector.broadcast %1 : vector<1x32xf32> to vector<64x32xf32>
      %41 = arith.mulf %40, %39 : vector<64x32xf32>
      %42 = arith.addf %35, %41 : vector<64x32xf32>
      %c97_i32 = arith.constant 97 : i32
      %43 = arith.addi %c97_i32, %29 : i32
      %c0_32 = arith.constant 0 : index
      %44 = arith.index_cast %43 : i32 to index
      %c0_33 = arith.constant 0 : index
      %45 = vector.load %arg2[%c0_32, %44, %c0_33] : memref<1x624x32xf32, #tpu.memory_space<vmem>>, vector<1x64x32xf32>
      %46 = vector.shape_cast %45 : vector<1x64x32xf32> to vector<64x32xf32>
      %47 = vector.broadcast %2 : vector<1x32xf32> to vector<64x32xf32>
      %48 = arith.mulf %47, %46 : vector<64x32xf32>
      %49 = arith.addf %42, %48 : vector<64x32xf32>
      %c119_i32 = arith.constant 119 : i32
      %50 = arith.addi %c119_i32, %29 : i32
      %c0_34 = arith.constant 0 : index
      %51 = arith.index_cast %50 : i32 to index
      %c0_35 = arith.constant 0 : index
      %52 = vector.load %arg2[%c0_34, %51, %c0_35] : memref<1x624x32xf32, #tpu.memory_space<vmem>>, vector<1x64x32xf32>
      %53 = vector.shape_cast %52 : vector<1x64x32xf32> to vector<64x32xf32>
      %54 = vector.broadcast %3 : vector<1x32xf32> to vector<64x32xf32>
      %55 = arith.mulf %54, %53 : vector<64x32xf32>
      %56 = arith.addf %49, %55 : vector<64x32xf32>
      %c120_i32 = arith.constant 120 : i32
      %57 = arith.addi %c120_i32, %29 : i32
      %c0_36 = arith.constant 0 : index
      %58 = arith.index_cast %57 : i32 to index
      %c0_37 = arith.constant 0 : index
      %59 = vector.load %arg2[%c0_36, %58, %c0_37] : memref<1x624x32xf32, #tpu.memory_space<vmem>>, vector<1x64x32xf32>
      %60 = vector.shape_cast %59 : vector<1x64x32xf32> to vector<64x32xf32>
      %61 = vector.broadcast %4 : vector<1x32xf32> to vector<64x32xf32>
      %62 = arith.mulf %61, %60 : vector<64x32xf32>
      %63 = arith.addf %56, %62 : vector<64x32xf32>
      %c121_i32 = arith.constant 121 : i32
      %64 = arith.addi %c121_i32, %29 : i32
      %c0_38 = arith.constant 0 : index
      %65 = arith.index_cast %64 : i32 to index
      %c0_39 = arith.constant 0 : index
      %66 = vector.load %arg2[%c0_38, %65, %c0_39] : memref<1x624x32xf32, #tpu.memory_space<vmem>>, vector<1x64x32xf32>
      %67 = vector.shape_cast %66 : vector<1x64x32xf32> to vector<64x32xf32>
      %68 = vector.broadcast %5 : vector<1x32xf32> to vector<64x32xf32>
      %69 = arith.mulf %68, %67 : vector<64x32xf32>
      %70 = arith.addf %63, %69 : vector<64x32xf32>
      %c143_i32 = arith.constant 143 : i32
      %71 = arith.addi %c143_i32, %29 : i32
      %c0_40 = arith.constant 0 : index
      %72 = arith.index_cast %71 : i32 to index
      %c0_41 = arith.constant 0 : index
      %73 = vector.load %arg2[%c0_40, %72, %c0_41] : memref<1x624x32xf32, #tpu.memory_space<vmem>>, vector<1x64x32xf32>
      %74 = vector.shape_cast %73 : vector<1x64x32xf32> to vector<64x32xf32>
      %75 = vector.broadcast %6 : vector<1x32xf32> to vector<64x32xf32>
      %76 = arith.mulf %75, %74 : vector<64x32xf32>
      %77 = arith.addf %70, %76 : vector<64x32xf32>
      %c144_i32 = arith.constant 144 : i32
      %78 = arith.addi %c144_i32, %29 : i32
      %c0_42 = arith.constant 0 : index
      %79 = arith.index_cast %78 : i32 to index
      %c0_43 = arith.constant 0 : index
      %80 = vector.load %arg2[%c0_42, %79, %c0_43] : memref<1x624x32xf32, #tpu.memory_space<vmem>>, vector<1x64x32xf32>
      %81 = vector.shape_cast %80 : vector<1x64x32xf32> to vector<64x32xf32>
      %82 = vector.broadcast %7 : vector<1x32xf32> to vector<64x32xf32>
      %83 = arith.mulf %82, %81 : vector<64x32xf32>
      %84 = arith.addf %77, %83 : vector<64x32xf32>
      %c145_i32 = arith.constant 145 : i32
      %85 = arith.addi %c145_i32, %29 : i32
      %c0_44 = arith.constant 0 : index
      %86 = arith.index_cast %85 : i32 to index
      %c0_45 = arith.constant 0 : index
      %87 = vector.load %arg2[%c0_44, %86, %c0_45] : memref<1x624x32xf32, #tpu.memory_space<vmem>>, vector<1x64x32xf32>
      %88 = vector.shape_cast %87 : vector<1x64x32xf32> to vector<64x32xf32>
      %89 = vector.broadcast %8 : vector<1x32xf32> to vector<64x32xf32>
      %90 = arith.mulf %89, %88 : vector<64x32xf32>
      %91 = arith.addf %84, %90 : vector<64x32xf32>
      %c70_i32 = arith.constant 70 : i32
      %92 = arith.addi %c70_i32, %29 : i32
      %c0_46 = arith.constant 0 : index
      %93 = arith.index_cast %92 : i32 to index
      %c0_47 = arith.constant 0 : index
      %94 = vector.load %arg2[%c0_46, %93, %c0_47] : memref<1x624x32xf32, #tpu.memory_space<vmem>>, vector<1x64x32xf32>
      %95 = vector.shape_cast %94 : vector<1x64x32xf32> to vector<64x32xf32>
      %96 = vector.broadcast %9 : vector<1x32xf32> to vector<64x32xf32>
      %97 = arith.mulf %96, %95 : vector<64x32xf32>
      %98 = arith.addf %91, %97 : vector<64x32xf32>
      %c72_i32 = arith.constant 72 : i32
      %99 = arith.addi %c72_i32, %29 : i32
      %c0_48 = arith.constant 0 : index
      %100 = arith.index_cast %99 : i32 to index
      %c0_49 = arith.constant 0 : index
      %101 = vector.load %arg2[%c0_48, %100, %c0_49] : memref<1x624x32xf32, #tpu.memory_space<vmem>>, vector<1x64x32xf32>
      %102 = vector.shape_cast %101 : vector<1x64x32xf32> to vector<64x32xf32>
      %103 = vector.broadcast %10 : vector<1x32xf32> to vector<64x32xf32>
      %104 = arith.mulf %103, %102 : vector<64x32xf32>
      %105 = arith.addf %98, %104 : vector<64x32xf32>
      %c74_i32 = arith.constant 74 : i32
      %106 = arith.addi %c74_i32, %29 : i32
      %c0_50 = arith.constant 0 : index
      %107 = arith.index_cast %106 : i32 to index
      %c0_51 = arith.constant 0 : index
      %108 = vector.load %arg2[%c0_50, %107, %c0_51] : memref<1x624x32xf32, #tpu.memory_space<vmem>>, vector<1x64x32xf32>
      %109 = vector.shape_cast %108 : vector<1x64x32xf32> to vector<64x32xf32>
      %110 = vector.broadcast %11 : vector<1x32xf32> to vector<64x32xf32>
      %111 = arith.mulf %110, %109 : vector<64x32xf32>
      %112 = arith.addf %105, %111 : vector<64x32xf32>
      %c118_i32 = arith.constant 118 : i32
      %113 = arith.addi %c118_i32, %29 : i32
      %c0_52 = arith.constant 0 : index
      %114 = arith.index_cast %113 : i32 to index
      %c0_53 = arith.constant 0 : index
      %115 = vector.load %arg2[%c0_52, %114, %c0_53] : memref<1x624x32xf32, #tpu.memory_space<vmem>>, vector<1x64x32xf32>
      %116 = vector.shape_cast %115 : vector<1x64x32xf32> to vector<64x32xf32>
      %117 = vector.broadcast %12 : vector<1x32xf32> to vector<64x32xf32>
      %118 = arith.mulf %117, %116 : vector<64x32xf32>
      %119 = arith.addf %112, %118 : vector<64x32xf32>
      %c120_i32_54 = arith.constant 120 : i32
      %120 = arith.addi %c120_i32_54, %29 : i32
      %c0_55 = arith.constant 0 : index
      %121 = arith.index_cast %120 : i32 to index
      %c0_56 = arith.constant 0 : index
      %122 = vector.load %arg2[%c0_55, %121, %c0_56] : memref<1x624x32xf32, #tpu.memory_space<vmem>>, vector<1x64x32xf32>
      %123 = vector.shape_cast %122 : vector<1x64x32xf32> to vector<64x32xf32>
      %124 = vector.broadcast %13 : vector<1x32xf32> to vector<64x32xf32>
      %125 = arith.mulf %124, %123 : vector<64x32xf32>
      %126 = arith.addf %119, %125 : vector<64x32xf32>
      %c122_i32 = arith.constant 122 : i32
      %127 = arith.addi %c122_i32, %29 : i32
      %c0_57 = arith.constant 0 : index
      %128 = arith.index_cast %127 : i32 to index
      %c0_58 = arith.constant 0 : index
      %129 = vector.load %arg2[%c0_57, %128, %c0_58] : memref<1x624x32xf32, #tpu.memory_space<vmem>>, vector<1x64x32xf32>
      %130 = vector.shape_cast %129 : vector<1x64x32xf32> to vector<64x32xf32>
      %131 = vector.broadcast %14 : vector<1x32xf32> to vector<64x32xf32>
      %132 = arith.mulf %131, %130 : vector<64x32xf32>
      %133 = arith.addf %126, %132 : vector<64x32xf32>
      %c166_i32 = arith.constant 166 : i32
      %134 = arith.addi %c166_i32, %29 : i32
      %c0_59 = arith.constant 0 : index
      %135 = arith.index_cast %134 : i32 to index
      %c0_60 = arith.constant 0 : index
      %136 = vector.load %arg2[%c0_59, %135, %c0_60] : memref<1x624x32xf32, #tpu.memory_space<vmem>>, vector<1x64x32xf32>
      %137 = vector.shape_cast %136 : vector<1x64x32xf32> to vector<64x32xf32>
      %138 = vector.broadcast %15 : vector<1x32xf32> to vector<64x32xf32>
      %139 = arith.mulf %138, %137 : vector<64x32xf32>
      %140 = arith.addf %133, %139 : vector<64x32xf32>
      %c168_i32 = arith.constant 168 : i32
      %141 = arith.addi %c168_i32, %29 : i32
      %c0_61 = arith.constant 0 : index
      %142 = arith.index_cast %141 : i32 to index
      %c0_62 = arith.constant 0 : index
      %143 = vector.load %arg2[%c0_61, %142, %c0_62] : memref<1x624x32xf32, #tpu.memory_space<vmem>>, vector<1x64x32xf32>
      %144 = vector.shape_cast %143 : vector<1x64x32xf32> to vector<64x32xf32>
      %145 = vector.broadcast %16 : vector<1x32xf32> to vector<64x32xf32>
      %146 = arith.mulf %145, %144 : vector<64x32xf32>
      %147 = arith.addf %140, %146 : vector<64x32xf32>
      %c170_i32 = arith.constant 170 : i32
      %148 = arith.addi %c170_i32, %29 : i32
      %c0_63 = arith.constant 0 : index
      %149 = arith.index_cast %148 : i32 to index
      %c0_64 = arith.constant 0 : index
      %150 = vector.load %arg2[%c0_63, %149, %c0_64] : memref<1x624x32xf32, #tpu.memory_space<vmem>>, vector<1x64x32xf32>
      %151 = vector.shape_cast %150 : vector<1x64x32xf32> to vector<64x32xf32>
      %152 = vector.broadcast %17 : vector<1x32xf32> to vector<64x32xf32>
      %153 = arith.mulf %152, %151 : vector<64x32xf32>
      %154 = arith.addf %147, %153 : vector<64x32xf32>
      %c20_i32 = arith.constant 20 : i32
      %155 = arith.addi %c20_i32, %29 : i32
      %c0_65 = arith.constant 0 : index
      %156 = arith.index_cast %155 : i32 to index
      %c0_66 = arith.constant 0 : index
      %157 = vector.load %arg2[%c0_65, %156, %c0_66] : memref<1x624x32xf32, #tpu.memory_space<vmem>>, vector<1x64x32xf32>
      %158 = vector.shape_cast %157 : vector<1x64x32xf32> to vector<64x32xf32>
      %159 = vector.broadcast %18 : vector<1x32xf32> to vector<64x32xf32>
      %160 = arith.mulf %159, %158 : vector<64x32xf32>
      %161 = arith.addf %154, %160 : vector<64x32xf32>
      %c24_i32 = arith.constant 24 : i32
      %162 = arith.addi %c24_i32, %29 : i32
      %c0_67 = arith.constant 0 : index
      %163 = arith.index_cast %162 : i32 to index
      %c0_68 = arith.constant 0 : index
      %164 = vector.load %arg2[%c0_67, %163, %c0_68] : memref<1x624x32xf32, #tpu.memory_space<vmem>>, vector<1x64x32xf32>
      %165 = vector.shape_cast %164 : vector<1x64x32xf32> to vector<64x32xf32>
      %166 = vector.broadcast %19 : vector<1x32xf32> to vector<64x32xf32>
      %167 = arith.mulf %166, %165 : vector<64x32xf32>
      %168 = arith.addf %161, %167 : vector<64x32xf32>
      %c28_i32 = arith.constant 28 : i32
      %169 = arith.addi %c28_i32, %29 : i32
      %c0_69 = arith.constant 0 : index
      %170 = arith.index_cast %169 : i32 to index
      %c0_70 = arith.constant 0 : index
      %171 = vector.load %arg2[%c0_69, %170, %c0_70] : memref<1x624x32xf32, #tpu.memory_space<vmem>>, vector<1x64x32xf32>
      %172 = vector.shape_cast %171 : vector<1x64x32xf32> to vector<64x32xf32>
      %173 = vector.broadcast %20 : vector<1x32xf32> to vector<64x32xf32>
      %174 = arith.mulf %173, %172 : vector<64x32xf32>
      %175 = arith.addf %168, %174 : vector<64x32xf32>
      %c116_i32 = arith.constant 116 : i32
      %176 = arith.addi %c116_i32, %29 : i32
      %c0_71 = arith.constant 0 : index
      %177 = arith.index_cast %176 : i32 to index
      %c0_72 = arith.constant 0 : index
      %178 = vector.load %arg2[%c0_71, %177, %c0_72] : memref<1x624x32xf32, #tpu.memory_space<vmem>>, vector<1x64x32xf32>
      %179 = vector.shape_cast %178 : vector<1x64x32xf32> to vector<64x32xf32>
      %180 = vector.broadcast %21 : vector<1x32xf32> to vector<64x32xf32>
      %181 = arith.mulf %180, %179 : vector<64x32xf32>
      %182 = arith.addf %175, %181 : vector<64x32xf32>
      %c120_i32_73 = arith.constant 120 : i32
      %183 = arith.addi %c120_i32_73, %29 : i32
      %c0_74 = arith.constant 0 : index
      %184 = arith.index_cast %183 : i32 to index
      %c0_75 = arith.constant 0 : index
      %185 = vector.load %arg2[%c0_74, %184, %c0_75] : memref<1x624x32xf32, #tpu.memory_space<vmem>>, vector<1x64x32xf32>
      %186 = vector.shape_cast %185 : vector<1x64x32xf32> to vector<64x32xf32>
      %187 = vector.broadcast %22 : vector<1x32xf32> to vector<64x32xf32>
      %188 = arith.mulf %187, %186 : vector<64x32xf32>
      %189 = arith.addf %182, %188 : vector<64x32xf32>
      %c124_i32 = arith.constant 124 : i32
      %190 = arith.addi %c124_i32, %29 : i32
      %c0_76 = arith.constant 0 : index
      %191 = arith.index_cast %190 : i32 to index
      %c0_77 = arith.constant 0 : index
      %192 = vector.load %arg2[%c0_76, %191, %c0_77] : memref<1x624x32xf32, #tpu.memory_space<vmem>>, vector<1x64x32xf32>
      %193 = vector.shape_cast %192 : vector<1x64x32xf32> to vector<64x32xf32>
      %194 = vector.broadcast %23 : vector<1x32xf32> to vector<64x32xf32>
      %195 = arith.mulf %194, %193 : vector<64x32xf32>
      %196 = arith.addf %189, %195 : vector<64x32xf32>
      %c212_i32 = arith.constant 212 : i32
      %197 = arith.addi %c212_i32, %29 : i32
      %c0_78 = arith.constant 0 : index
      %198 = arith.index_cast %197 : i32 to index
      %c0_79 = arith.constant 0 : index
      %199 = vector.load %arg2[%c0_78, %198, %c0_79] : memref<1x624x32xf32, #tpu.memory_space<vmem>>, vector<1x64x32xf32>
      %200 = vector.shape_cast %199 : vector<1x64x32xf32> to vector<64x32xf32>
      %201 = vector.broadcast %24 : vector<1x32xf32> to vector<64x32xf32>
      %202 = arith.mulf %201, %200 : vector<64x32xf32>
      %203 = arith.addf %196, %202 : vector<64x32xf32>
      %c216_i32 = arith.constant 216 : i32
      %204 = arith.addi %c216_i32, %29 : i32
      %c0_80 = arith.constant 0 : index
      %205 = arith.index_cast %204 : i32 to index
      %c0_81 = arith.constant 0 : index
      %206 = vector.load %arg2[%c0_80, %205, %c0_81] : memref<1x624x32xf32, #tpu.memory_space<vmem>>, vector<1x64x32xf32>
      %207 = vector.shape_cast %206 : vector<1x64x32xf32> to vector<64x32xf32>
      %208 = vector.broadcast %25 : vector<1x32xf32> to vector<64x32xf32>
      %209 = arith.mulf %208, %207 : vector<64x32xf32>
      %210 = arith.addf %203, %209 : vector<64x32xf32>
      %c220_i32 = arith.constant 220 : i32
      %211 = arith.addi %c220_i32, %29 : i32
      %c0_82 = arith.constant 0 : index
      %212 = arith.index_cast %211 : i32 to index
      %c0_83 = arith.constant 0 : index
      %213 = vector.load %arg2[%c0_82, %212, %c0_83] : memref<1x624x32xf32, #tpu.memory_space<vmem>>, vector<1x64x32xf32>
      %214 = vector.shape_cast %213 : vector<1x64x32xf32> to vector<64x32xf32>
      %215 = vector.broadcast %26 : vector<1x32xf32> to vector<64x32xf32>
      %216 = arith.mulf %215, %214 : vector<64x32xf32>
      %217 = arith.addf %210, %216 : vector<64x32xf32>
      %c0_84 = arith.constant 0 : index
      %218 = arith.index_cast %29 : i32 to index
      %c0_85 = arith.constant 0 : index
      %219 = vector.load %arg4[%c0_84, %218, %c0_85] : memref<1x384x32xf32, #tpu.memory_space<vmem>>, vector<1x64x32xf32>
      %220 = vector.shape_cast %219 : vector<1x64x32xf32> to vector<64x32xf32>
      %221 = vector.shape_cast %217 : vector<64x32xf32> to vector<1x64x32xf32>
      tpu.vector_store %arg4[%c0_84, %218, %c0_85], %221 {strides = array<i32>} : memref<1x384x32xf32, #tpu.memory_space<vmem>>, vector<1x64x32xf32>,
    }
    %c6_i32_27 = arith.constant 6 : i32
    return
  }
  func.func @transform_0(%arg0: i32, %arg1: i32) -> (i32, i32, i32) {
    %c0_i32 = arith.constant 0 : i32
    %c0_i32_0 = arith.constant 0 : i32
    return %arg0, %c0_i32, %arg1 : i32, i32, i32
  }
  func.func @transform_1(%arg0: i32, %arg1: i32) -> (i32, i32) {
    %c0_i32 = arith.constant 0 : i32
    %c0_i32_0 = arith.constant 0 : i32
    return %c0_i32, %arg1 : i32, i32
  }
  func.func @transform_2(%arg0: i32, %arg1: i32) -> (i32, i32, i32) {
    %c0_i32 = arith.constant 0 : i32
    %c0_i32_0 = arith.constant 0 : i32
    return %arg0, %c0_i32, %arg1 : i32, i32, i32
  }
}

</mosaic_0001>

<llo_original>
// kernel: multi_scale_dilated_conv.1
$region0: #{multi_scale_dilated_conv.1}
  #allocation0 [shape = 'u32[]', space=smem, size = 0x4, offset = 0x4, fixed_abs, tag = 'smem constant byte address 0x4 - core index']
  #allocation1 [shape = 'u32[144,128]{1,0:T(1,128)}', space=vmem, size = 0x12000, scoped, tag = 'internal scratch']
  %s0 = inlined_call_operand.vmem [shape: f32[2,624,32], index: 0, kind: input, shape index: {}]
  %s1 = inlined_call_operand.vmem [shape: f32[27,32], index: 1, kind: input, shape index: {}]
  %s2 = inlined_call_operand.vmem [shape: f32[2,384,32], index: 2, kind: output, shape index: {}]
  %s3 = sld [smem:[#allocation0]]
  $region48: #{multi_scale_dilated_conv.1} parent=0
    _
  %s5 = ssub.s32 1, %s3
  %s6 = scalar_select 0, %s5, %s3
  loop: start=0, step=1, limit=4
  $region2: #{multi_scale_dilated_conv.1} parent=0 // loop_pre_header
    _
  $region3: #{multi_scale_dilated_conv.1} parent=0 // loop_header
    %s8 = sphi 0, %s12
    %p9 = scmp.ge.s32.totalorder %s8, 4
    %s15 = sphi 0, %s27
    %s16 = sphi 0, %s23
    %s17 = sphi 0, %s15
    %s18 = sphi 0, %s16
    %s19 = sphi 0, %s17
    %s20 = sphi 0, %s18
    %s32 = sphi 0, %s34
    %s35 = sphi 0, %s32
    %s36 = sphi 0, %s35
    %s52 = sphi 0, %s36
    %s58 = sphi 0, %s60
    %s61 = sphi 0, %s58
    %s62 = sphi 0, %s61
    %s78 = sphi 0, %s62
    %s86 = sphi 0, %s88
    %s89 = sphi 0, %s86
    %s90 = sphi 0, %s89
    %s106 = sphi 0, %s90
  $region4: #{multi_scale_dilated_conv.1} parent=0 // loop_header_branch
    %11 = sbr.rel (%p9) target = $region8
  $region5: #{multi_scale_dilated_conv.1} parent=0 // loop_body
    %s13 = ssub.s32 %s8, 1
    %s14 = ssub.s32 %s8, 2
    %s21 = sadd.s32 1, %s16
    %p22 = scmp.ge.s32.totalorder %s21, 1
    %s23 = scalar_select %p22, 0, %s21
    %s24 = sadd.s32 1, %s15
    %s25 = scalar_select %p22, %s24, %s15
    %p26 = scmp.ge.s32.totalorder %s25, 2
    %s27 = scalar_select %p26, 0, %s25
    %s28 = ssub.s32 %s15, %s27
    %s29 = ssub.s32 %s16, %s23
    %s30 = sor.u32 %s28, %s29
    %p31 = scmp.eq.s32.totalorder %s30, 0
    %s33 = sadd.s32 %s32, 1
    %s34 = scalar_select %p31, %s32, %s33
    %p37 = pneg %p31
    %p38 = scmp.eq.s32.totalorder %s8, 1
    %p39 = por %p37, %p38
    %p40 = scmp.ne.s32.totalorder %s32, %s35
    %p41 = scmp.eq.s32.totalorder %s8, 0
    %p42 = por %p40, %p41
    %p43 = scmp.ne.s32.totalorder %s32, %s35
    %p44 = scmp.eq.s32.totalorder %s13, 1
    %p45 = por %p43, %p44
    %p46 = scmp.ne.s32.totalorder %s35, %s36
    %p47 = scmp.eq.s32.totalorder %s13, 0
    %p48 = por %p46, %p47
    %p49 = scmp.ne.s32.totalorder %s35, %s36
    %p50 = scmp.eq.s32.totalorder %s14, 1
    %p51 = por %p49, %p50
    %p53 = scmp.ne.s32.totalorder %s36, %s52
    %p54 = scmp.eq.s32.totalorder %s14, 0
    %p55 = por %p53, %p54
    %s56 = ssub.s32 %s16, %s23
    %p57 = scmp.eq.s32.totalorder %s56, 0
    %s59 = sadd.s32 %s58, 1
    %s60 = scalar_select %p57, %s58, %s59
    %p63 = pneg %p57
    %p64 = scmp.eq.s32.totalorder %s8, 1
    %p65 = por %p63, %p64
    %p66 = scmp.ne.s32.totalorder %s58, %s61
    %p67 = scmp.eq.s32.totalorder %s8, 0
    %p68 = por %p66, %p67
    %p69 = scmp.ne.s32.totalorder %s58, %s61
    %p70 = scmp.eq.s32.totalorder %s13, 1
    %p71 = por %p69, %p70
    %p72 = scmp.ne.s32.totalorder %s61, %s62
    %p73 = scmp.eq.s32.totalorder %s13, 0
    %p74 = por %p72, %p73
    %p75 = scmp.ne.s32.totalorder %s61, %s62
    %p76 = scmp.eq.s32.totalorder %s14, 1
    %p77 = por %p75, %p76
    %p79 = scmp.ne.s32.totalorder %s62, %s78
    %p80 = scmp.eq.s32.totalorder %s14, 0
    %p81 = por %p79, %p80
    %s82 = ssub.s32 %s15, %s27
    %s83 = ssub.s32 %s16, %s23
    %s84 = sor.u32 %s82, %s83
    %p85 = scmp.eq.s32.totalorder %s84, 0
    %s87 = sadd.s32 %s86, 1
    %s88 = scalar_select %p85, %s86, %s87
    %p91 = pneg %p85
    %p92 = scmp.eq.s32.totalorder %s8, 1
    %p93 = por %p91, %p92
    %p94 = scmp.ne.s32.totalorder %s86, %s89
    %p95 = scmp.eq.s32.totalorder %s8, 0
    %p96 = por %p94, %p95
    %p97 = scmp.ne.s32.totalorder %s86, %s89
    %p98 = scmp.eq.s32.totalorder %s13, 1
    %p99 = por %p97, %p98
    %p100 = scmp.ne.s32.totalorder %s89, %s90
    %p101 = scmp.eq.s32.totalorder %s13, 0
    %p102 = por %p100, %p101
    %p103 = scmp.ne.s32.totalorder %s89, %s90
    %p104 = scmp.eq.s32.totalorder %s14, 1
    %p105 = por %p103, %p104
    %p107 = scmp.ne.s32.totalorder %s90, %s106
    %p108 = scmp.eq.s32.totalorder %s14, 0
    %p109 = por %p107, %p108
    %p110 = scmp.le.s32.totalorder 1, %s8
    %p111 = scmp.lt.s32.totalorder %s8, 3
    %p112 = pnand %p110, %p111
    %p113 = pneg %p112
    // Predicated region
    $region9: #{multi_scale_dilated_conv.1} parent=5 // pred_check
      _
    $region10: #{multi_scale_dilated_conv.1} parent=5 // pred_check_branch
      %115 = sbr.rel (%p112) target = $region12
    $region11: #{multi_scale_dilated_conv.1} parent=5 // pred_region
      %s116 = ssub.s32 %s8, 1
      // Predicated region
      $region13: #{multi_scale_dilated_conv.1} parent=11 // pred_check
        %p117 = pneg %p74
      $region14: #{multi_scale_dilated_conv.1} parent=11 // pred_check_branch
        %119 = sbr.rel (%p117) target = $region16
      $region15: #{multi_scale_dilated_conv.1} parent=11 // pred_region
        %p120 = scmp.lt.s32.totalorder %s18, 0
        %s121 = scalar_select %p120, %s18, 0
        %s122 = smul.addr %s121, 8
        %s123 = scalar_lea.vmem %s1, %s122
      $region16: #{multi_scale_dilated_conv.1} parent=11 // pred_fallthru
        _
    $region12: #{multi_scale_dilated_conv.1} parent=5 // pred_fallthru
      _
    %p124 = scmp.lt.s32.totalorder %s8, 2
    // Predicated region
    $region17: #{multi_scale_dilated_conv.1} parent=5 // pred_check
      %p125 = pneg %p124
    $region18: #{multi_scale_dilated_conv.1} parent=5 // pred_check_branch
      %127 = sbr.rel (%p125) target = $region20
    $region19: #{multi_scale_dilated_conv.1} parent=5 // pred_region
      // Predicated region
      $region21: #{multi_scale_dilated_conv.1} parent=19 // pred_check
        %p128 = pneg %p42
      $region22: #{multi_scale_dilated_conv.1} parent=19 // pred_check_branch
        %130 = sbr.rel (%p128) target = $region24
      $region23: #{multi_scale_dilated_conv.1} parent=19 // pred_region
        %p131 = scmp.lt.s32.totalorder %s15, 1
        %s132 = scalar_select %p131, %s15, 1
        %p133 = scmp.lt.s32.totalorder %s16, 0
        %s134 = scalar_select %p133, %s16, 0
        %s135 = smul.addr %s132, 78
        %s136 = sadd.s32 %s134, %s135
        %s137 = smul.addr %s136, 8
        %s138 = scalar_lea.vmem %s0, %s137
      $region24: #{multi_scale_dilated_conv.1} parent=19 // pred_fallthru
        _
    $region20: #{multi_scale_dilated_conv.1} parent=5 // pred_fallthru
      _
    %p139 = scmp.le.s32.totalorder 1, %s8
    %p140 = scmp.lt.s32.totalorder %s8, 3
    %p141 = pnand %p139, %p140
    %p142 = pneg %p141
    // Predicated region
    $region25: #{multi_scale_dilated_conv.1} parent=5 // pred_check
      _
    $region26: #{multi_scale_dilated_conv.1} parent=5 // pred_check_branch
      %144 = sbr.rel (%p141) target = $region28
    $region27: #{multi_scale_dilated_conv.1} parent=5 // pred_region
      %s145 = ssub.s32 %s8, 1
      %p146 = scmp.lt.s32.totalorder %s17, 1
      %s147 = scalar_select %p146, %s17, 1
      %p148 = scmp.lt.s32.totalorder %s18, 0
      %s149 = scalar_select %p148, %s18, 0
      %s150 = smul.addr %s147, 78
      %s151 = sadd.s32 %s149, %s150
      %s152 = smul.addr %s151, 8
      %s153 = scalar_lea.vmem %s0, %s152
      %p154 = pneg %p48
      %p155 = pneg %p45
      %p156 = scmp.lt.s32.totalorder %s18, 0
      %s157 = scalar_select %p156, %s18, 0
      %s158 = smul.addr %s157, 8
      %s159 = scalar_lea.vmem %s1, %s158
      %p160 = pneg %p74
      %p161 = pneg %p71
      %p162 = pneg %p102
      %p163 = pneg %p99
      %p164 = scmp.lt.s32.totalorder %s17, 1
      %s165 = scalar_select %p164, %s17, 1
      %p166 = scmp.lt.s32.totalorder %s18, 0
      %s167 = scalar_select %p166, %s18, 0
      %s168 = smul.addr %s165, 48
      %s169 = sadd.s32 %s167, %s168
      %s170 = smul.addr %s169, 8
      %s171 = scalar_lea.vmem %s2, %s170
      %p172 = scmp.lt.s32.totalorder %s17, 1
      %s173 = scalar_select %p172, %s17, 1
      %p174 = scmp.lt.s32.totalorder %s18, 0
      %s175 = scalar_select %p174, %s18, 0
      %s176 = smul.addr %s173, 78
      %s177 = sadd.s32 %s175, %s176
      %s178 = smul.addr %s177, 8
      %s179 = scalar_lea.vmem %s0, %s178
      %p180 = scmp.lt.s32.totalorder %s18, 0
      %s181 = scalar_select %p180, %s18, 0
      %s182 = smul.addr %s181, 8
      %s183 = scalar_lea.vmem %s1, %s182
      %p184 = scmp.lt.s32.totalorder %s17, 1
      %s185 = scalar_select %p184, %s17, 1
      %p186 = scmp.lt.s32.totalorder %s18, 0
      %s187 = scalar_select %p186, %s18, 0
      %s188 = smul.addr %s185, 48
      %s189 = sadd.s32 %s187, %s188
      %s190 = smul.addr %s189, 8
      %s191 = scalar_lea.vmem %s2, %s190
      %v192 = vld [vmem:[%s183] sm:$0x1]
      %v193 = vld [vmem:[%s183 + $0x1] sm:$0x1]
      %v194 = vld [vmem:[%s183 + $0x2] sm:$0x1]
      %v195 = vld [vmem:[%s183 + $0x3] sm:$0x1]
      %v196 = vld [vmem:[%s183 + $0x4] sm:$0x1]
      %v197 = vld [vmem:[%s183 + $0x5] sm:$0x1]
      %v198 = vld [vmem:[%s183 + $0x6] sm:$0x1]
      %v199 = vld [vmem:[%s183 + $0x7] sm:$0x1]
      %v200 = vld [vmem:[%s183 + $0x8] sm:$0x1]
      %v201 = vld [vmem:[%s183 + $0x9] sm:$0x1]
      %v202 = vld [vmem:[%s183 + $0xa] sm:$0x1]
      %v203 = vld [vmem:[%s183 + $0xb] sm:$0x1]
      %v204 = vld [vmem:[%s183 + $0xc] sm:$0x1]
      %v205 = vld [vmem:[%s183 + $0xd] sm:$0x1]
      %v206 = vld [vmem:[%s183 + $0xe] sm:$0x1]
      %v207 = vld [vmem:[%s183 + $0xf] sm:$0x1]
      %v208 = vld [vmem:[%s183 + $0x10] sm:$0x1]
      %v209 = vld [vmem:[%s183 + $0x11] sm:$0x1]
      %v210 = vld [vmem:[%s183 + $0x12] sm:$0x1]
      %v211 = vld [vmem:[%s183 + $0x13] sm:$0x1]
      %v212 = vld [vmem:[%s183 + $0x14] sm:$0x1]
      %v213 = vld [vmem:[%s183 + $0x15] sm:$0x1]
      %v214 = vld [vmem:[%s183 + $0x16] sm:$0x1]
      %v215 = vld [vmem:[%s183 + $0x17] sm:$0x1]
      %v216 = vld [vmem:[%s183 + $0x18] sm:$0x1]
      %v217 = vld [vmem:[%s183 + $0x19] sm:$0x1]
      %v218 = vld [vmem:[%s183 + $0x1a] sm:$0x1]
      loop: start=0, step=1, limit=6
      $region29: #{multi_scale_dilated_conv.1} parent=27 // loop_pre_header
        _
      $region30: #{multi_scale_dilated_conv.1} parent=27 // loop_header
        %s220 = sphi 0, %s224
        %p221 = scmp.ge.s32.totalorder %s220, 6
      $region31: #{multi_scale_dilated_conv.1} parent=27 // loop_header_branch
        %223 = sbr.rel (%p221) target = $region35
      $region32: #{multi_scale_dilated_conv.1} parent=27 // loop_body
        %s225 = smul.u32 %s220, 64
        %s226 = sadd.s32 %s225, 95
        %s227 = scalar_lea.vmem %s179, %s226
        %v228 = vld [vmem:[%s227] sm:$0xff]
        %v229 = vld [vmem:[%s227 + $0x8] sm:$0xff]
        %v230 = vld [vmem:[%s227 + $0x10] sm:$0xff]
        %v231 = vld [vmem:[%s227 + $0x18] sm:$0xff]
        %v232 = vld [vmem:[%s227 + $0x20] sm:$0xff]
        %v233 = vld [vmem:[%s227 + $0x28] sm:$0xff]
        %v234 = vld [vmem:[%s227 + $0x30] sm:$0xff]
        %v235 = vld [vmem:[%s227 + $0x38] sm:$0xff]
        %v236 = vlaneseq
        %v237 = vshrl.u32 %v236, 7
        %v238 = vsub.s32 0, %v237
        %v239 = vrot.slane %v192, %v238
        %v240 = vmul.f32 %v239, %v228
        %v241 = vmul.f32 %v239, %v229
        %v242 = vmul.f32 %v239, %v230
        %v243 = vmul.f32 %v239, %v231
        %v244 = vmul.f32 %v239, %v232
        %v245 = vmul.f32 %v239, %v233
        %v246 = vmul.f32 %v239, %v234
        %v247 = vmul.f32 %v239, %v235
        %s248 = sadd.s32 %s225, 96
        %s249 = scalar_lea.vmem %s179, %s248
        %v250 = vld [vmem:[%s249] sm:$0xff]
        %v251 = vld [vmem:[%s249 + $0x8] sm:$0xff]
        %v252 = vld [vmem:[%s249 + $0x10] sm:$0xff]
        %v253 = vld [vmem:[%s249 + $0x18] sm:$0xff]
        %v254 = vld [vmem:[%s249 + $0x20] sm:$0xff]
        %v255 = vld [vmem:[%s249 + $0x28] sm:$0xff]
        %v256 = vld [vmem:[%s249 + $0x30] sm:$0xff]
        %v257 = vld [vmem:[%s249 + $0x38] sm:$0xff]
        %v258 = vlaneseq
        %v259 = vshrl.u32 %v258, 7
        %v260 = vsub.s32 0, %v259
        %v261 = vrot.slane %v193, %v260
        %v262 = vmul.f32 %v261, %v250
        %v263 = vmul.f32 %v261, %v251
        %v264 = vmul.f32 %v261, %v252
        %v265 = vmul.f32 %v261, %v253
        %v266 = vmul.f32 %v261, %v254
        %v267 = vmul.f32 %v261, %v255
        %v268 = vmul.f32 %v261, %v256
        %v269 = vmul.f32 %v261, %v257
        %v270 = vadd.f32 %v240, %v262
        %v271 = vadd.f32 %v241, %v263
        %v272 = vadd.f32 %v242, %v264
        %v273 = vadd.f32 %v243, %v265
        %v274 = vadd.f32 %v244, %v266
        %v275 = vadd.f32 %v245, %v267
        %v276 = vadd.f32 %v246, %v268
        %v277 = vadd.f32 %v247, %v269
        %s278 = sadd.s32 %s225, 97
        %s279 = scalar_lea.vmem %s179, %s278
        %v280 = vld [vmem:[%s279] sm:$0xff]
        %v281 = vld [vmem:[%s279 + $0x8] sm:$0xff]
        %v282 = vld [vmem:[%s279 + $0x10] sm:$0xff]
        %v283 = vld [vmem:[%s279 + $0x18] sm:$0xff]
        %v284 = vld [vmem:[%s279 + $0x20] sm:$0xff]
        %v285 = vld [vmem:[%s279 + $0x28] sm:$0xff]
        %v286 = vld [vmem:[%s279 + $0x30] sm:$0xff]
        %v287 = vld [vmem:[%s279 + $0x38] sm:$0xff]
        %v288 = vlaneseq
        %v289 = vshrl.u32 %v288, 7
        %v290 = vsub.s32 0, %v289
        %v291 = vrot.slane %v194, %v290
        %v292 = vmul.f32 %v291, %v280
        %v293 = vmul.f32 %v291, %v281
        %v294 = vmul.f32 %v291, %v282
        %v295 = vmul.f32 %v291, %v283
        %v296 = vmul.f32 %v291, %v284
        %v297 = vmul.f32 %v291, %v285
        %v298 = vmul.f32 %v291, %v286
        %v299 = vmul.f32 %v291, %v287
        %v300 = vadd.f32 %v270, %v292
        %v301 = vadd.f32 %v271, %v293
        %v302 = vadd.f32 %v272, %v294
        %v303 = vadd.f32 %v273, %v295
        %v304 = vadd.f32 %v274, %v296
        %v305 = vadd.f32 %v275, %v297
        %v306 = vadd.f32 %v276, %v298
        %v307 = vadd.f32 %v277, %v299
        %s308 = sadd.s32 %s225, 119
        %s309 = scalar_lea.vmem %s179, %s308
        %v310 = vld [vmem:[%s309] sm:$0xff]
        %v311 = vld [vmem:[%s309 + $0x8] sm:$0xff]
        %v312 = vld [vmem:[%s309 + $0x10] sm:$0xff]
        %v313 = vld [vmem:[%s309 + $0x18] sm:$0xff]
        %v314 = vld [vmem:[%s309 + $0x20] sm:$0xff]
        %v315 = vld [vmem:[%s309 + $0x28] sm:$0xff]
        %v316 = vld [vmem:[%s309 + $0x30] sm:$0xff]
        %v317 = vld [vmem:[%s309 + $0x38] sm:$0xff]
        %v318 = vlaneseq
        %v319 = vshrl.u32 %v318, 7
        %v320 = vsub.s32 0, %v319
        %v321 = vrot.slane %v195, %v320
        %v322 = vmul.f32 %v321, %v310
        %v323 = vmul.f32 %v321, %v311
        %v324 = vmul.f32 %v321, %v312
        %v325 = vmul.f32 %v321, %v313
        %v326 = vmul.f32 %v321, %v314
        %v327 = vmul.f32 %v321, %v315
        %v328 = vmul.f32 %v321, %v316
        %v329 = vmul.f32 %v321, %v317
        %v330 = vadd.f32 %v300, %v322
        %v331 = vadd.f32 %v301, %v323
        %v332 = vadd.f32 %v302, %v324
        %v333 = vadd.f32 %v303, %v325
        %v334 = vadd.f32 %v304, %v326
        %v335 = vadd.f32 %v305, %v327
        %v336 = vadd.f32 %v306, %v328
        %v337 = vadd.f32 %v307, %v329
        %s338 = sadd.s32 %s225, 120
        %s339 = scalar_lea.vmem %s179, %s338
        %v340 = vld [vmem:[%s339] sm:$0xff]
        %v341 = vld [vmem:[%s339 + $0x8] sm:$0xff]
        %v342 = vld [vmem:[%s339 + $0x10] sm:$0xff]
        %v343 = vld [vmem:[%s339 + $0x18] sm:$0xff]
        %v344 = vld [vmem:[%s339 + $0x20] sm:$0xff]
        %v345 = vld [vmem:[%s339 + $0x28] sm:$0xff]
        %v346 = vld [vmem:[%s339 + $0x30] sm:$0xff]
        %v347 = vld [vmem:[%s339 + $0x38] sm:$0xff]
        %v348 = vlaneseq
        %v349 = vshrl.u32 %v348, 7
        %v350 = vsub.s32 0, %v349
        %v351 = vrot.slane %v196, %v350
        %v352 = vmul.f32 %v351, %v340
        %v353 = vmul.f32 %v351, %v341
        %v354 = vmul.f32 %v351, %v342
        %v355 = vmul.f32 %v351, %v343
        %v356 = vmul.f32 %v351, %v344
        %v357 = vmul.f32 %v351, %v345
        %v358 = vmul.f32 %v351, %v346
        %v359 = vmul.f32 %v351, %v347
        %v360 = vadd.f32 %v330, %v352
        %v361 = vadd.f32 %v331, %v353
        %v362 = vadd.f32 %v332, %v354
        %v363 = vadd.f32 %v333, %v355
        %v364 = vadd.f32 %v334, %v356
        %v365 = vadd.f32 %v335, %v357
        %v366 = vadd.f32 %v336, %v358
        %v367 = vadd.f32 %v337, %v359
        %s368 = sadd.s32 %s225, 121
        %s369 = scalar_lea.vmem %s179, %s368
        %v370 = vld [vmem:[%s369] sm:$0xff]
        %v371 = vld [vmem:[%s369 + $0x8] sm:$0xff]
        %v372 = vld [vmem:[%s369 + $0x10] sm:$0xff]
        %v373 = vld [vmem:[%s369 + $0x18] sm:$0xff]
        %v374 = vld [vmem:[%s369 + $0x20] sm:$0xff]
        %v375 = vld [vmem:[%s369 + $0x28] sm:$0xff]
        %v376 = vld [vmem:[%s369 + $0x30] sm:$0xff]
        %v377 = vld [vmem:[%s369 + $0x38] sm:$0xff]
        %v378 = vlaneseq
        %v379 = vshrl.u32 %v378, 7
        %v380 = vsub.s32 0, %v379
        %v381 = vrot.slane %v197, %v380
        %v382 = vmul.f32 %v381, %v370
        %v383 = vmul.f32 %v381, %v371
        %v384 = vmul.f32 %v381, %v372
        %v385 = vmul.f32 %v381, %v373
        %v386 = vmul.f32 %v381, %v374
        %v387 = vmul.f32 %v381, %v375
        %v388 = vmul.f32 %v381, %v376
        %v389 = vmul.f32 %v381, %v377
        %v390 = vadd.f32 %v360, %v382
        %v391 = vadd.f32 %v361, %v383
        %v392 = vadd.f32 %v362, %v384
        %v393 = vadd.f32 %v363, %v385
        %v394 = vadd.f32 %v364, %v386
        %v395 = vadd.f32 %v365, %v387
        %v396 = vadd.f32 %v366, %v388
        %v397 = vadd.f32 %v367, %v389
        %s398 = sadd.s32 %s225, 143
        %s399 = scalar_lea.vmem %s179, %s398
        %v400 = vld [vmem:[%s399] sm:$0xff]
        %v401 = vld [vmem:[%s399 + $0x8] sm:$0xff]
        %v402 = vld [vmem:[%s399 + $0x10] sm:$0xff]
        %v403 = vld [vmem:[%s399 + $0x18] sm:$0xff]
        %v404 = vld [vmem:[%s399 + $0x20] sm:$0xff]
        %v405 = vld [vmem:[%s399 + $0x28] sm:$0xff]
        %v406 = vld [vmem:[%s399 + $0x30] sm:$0xff]
        %v407 = vld [vmem:[%s399 + $0x38] sm:$0xff]
        %v408 = vlaneseq
        %v409 = vshrl.u32 %v408, 7
        %v410 = vsub.s32 0, %v409
        %v411 = vrot.slane %v198, %v410
        %v412 = vmul.f32 %v411, %v400
        %v413 = vmul.f32 %v411, %v401
        %v414 = vmul.f32 %v411, %v402
        %v415 = vmul.f32 %v411, %v403
        %v416 = vmul.f32 %v411, %v404
        %v417 = vmul.f32 %v411, %v405
        %v418 = vmul.f32 %v411, %v406
        %v419 = vmul.f32 %v411, %v407
        %v420 = vadd.f32 %v390, %v412
        %v421 = vadd.f32 %v391, %v413
        %v422 = vadd.f32 %v392, %v414
        %v423 = vadd.f32 %v393, %v415
        %v424 = vadd.f32 %v394, %v416
        %v425 = vadd.f32 %v395, %v417
        %v426 = vadd.f32 %v396, %v418
        %v427 = vadd.f32 %v397, %v419
        %s428 = sadd.s32 %s225, 144
        %s429 = scalar_lea.vmem %s179, %s428
        %v430 = vld [vmem:[%s429] sm:$0xff]
        %v431 = vld [vmem:[%s429 + $0x8] sm:$0xff]
        %v432 = vld [vmem:[%s429 + $0x10] sm:$0xff]
        %v433 = vld [vmem:[%s429 + $0x18] sm:$0xff]
        %v434 = vld [vmem:[%s429 + $0x20] sm:$0xff]
        %v435 = vld [vmem:[%s429 + $0x28] sm:$0xff]
        %v436 = vld [vmem:[%s429 + $0x30] sm:$0xff]
        %v437 = vld [vmem:[%s429 + $0x38] sm:$0xff]
        %v438 = vlaneseq
        %v439 = vshrl.u32 %v438, 7
        %v440 = vsub.s32 0, %v439
        %v441 = vrot.slane %v199, %v440
        %v442 = vmul.f32 %v441, %v430
        %v443 = vmul.f32 %v441, %v431
        %v444 = vmul.f32 %v441, %v432
        %v445 = vmul.f32 %v441, %v433
        %v446 = vmul.f32 %v441, %v434
        %v447 = vmul.f32 %v441, %v435
        %v448 = vmul.f32 %v441, %v436
        %v449 = vmul.f32 %v441, %v437
        %v450 = vadd.f32 %v420, %v442
        %v451 = vadd.f32 %v421, %v443
        %v452 = vadd.f32 %v422, %v444
        %v453 = vadd.f32 %v423, %v445
        %v454 = vadd.f32 %v424, %v446
        %v455 = vadd.f32 %v425, %v447
        %v456 = vadd.f32 %v426, %v448
        %v457 = vadd.f32 %v427, %v449
        %s458 = sadd.s32 %s225, 145
        %s459 = scalar_lea.vmem %s179, %s458
        %v460 = vld [vmem:[%s459] sm:$0xff]
        %v461 = vld [vmem:[%s459 + $0x8] sm:$0xff]
        %v462 = vld [vmem:[%s459 + $0x10] sm:$0xff]
        %v463 = vld [vmem:[%s459 + $0x18] sm:$0xff]
        %v464 = vld [vmem:[%s459 + $0x20] sm:$0xff]
        %v465 = vld [vmem:[%s459 + $0x28] sm:$0xff]
        %v466 = vld [vmem:[%s459 + $0x30] sm:$0xff]
        %v467 = vld [vmem:[%s459 + $0x38] sm:$0xff]
        %v468 = vlaneseq
        %v469 = vshrl.u32 %v468, 7
        %v470 = vsub.s32 0, %v469
        %v471 = vrot.slane %v200, %v470
        %v472 = vmul.f32 %v471, %v460
        %v473 = vmul.f32 %v471, %v461
        %v474 = vmul.f32 %v471, %v462
        %v475 = vmul.f32 %v471, %v463
        %v476 = vmul.f32 %v471, %v464
        %v477 = vmul.f32 %v471, %v465
        %v478 = vmul.f32 %v471, %v466
        %v479 = vmul.f32 %v471, %v467
        %v480 = vadd.f32 %v450, %v472
        %v481 = vadd.f32 %v451, %v473
        %v482 = vadd.f32 %v452, %v474
        %v483 = vadd.f32 %v453, %v475
        %v484 = vadd.f32 %v454, %v476
        %v485 = vadd.f32 %v455, %v477
        %v486 = vadd.f32 %v456, %v478
        %v487 = vadd.f32 %v457, %v479
        %s488 = sadd.s32 %s225, 70
        %s489 = scalar_lea.vmem %s179, %s488
        %v490 = vld [vmem:[%s489] sm:$0xff]
        %v491 = vld [vmem:[%s489 + $0x8] sm:$0xff]
        %v492 = vld [vmem:[%s489 + $0x10] sm:$0xff]
        %v493 = vld [vmem:[%s489 + $0x18] sm:$0xff]
        %v494 = vld [vmem:[%s489 + $0x20] sm:$0xff]
        %v495 = vld [vmem:[%s489 + $0x28] sm:$0xff]
        %v496 = vld [vmem:[%s489 + $0x30] sm:$0xff]
        %v497 = vld [vmem:[%s489 + $0x38] sm:$0xff]
        %v498 = vlaneseq
        %v499 = vshrl.u32 %v498, 7
        %v500 = vsub.s32 0, %v499
        %v501 = vrot.slane %v201, %v500
        %v502 = vmul.f32 %v501, %v490
        %v503 = vmul.f32 %v501, %v491
        %v504 = vmul.f32 %v501, %v492
        %v505 = vmul.f32 %v501, %v493
        %v506 = vmul.f32 %v501, %v494
        %v507 = vmul.f32 %v501, %v495
        %v508 = vmul.f32 %v501, %v496
        %v509 = vmul.f32 %v501, %v497
        %v510 = vadd.f32 %v480, %v502
        %v511 = vadd.f32 %v481, %v503
        %v512 = vadd.f32 %v482, %v504
        %v513 = vadd.f32 %v483, %v505
        %v514 = vadd.f32 %v484, %v506
        %v515 = vadd.f32 %v485, %v507
        %v516 = vadd.f32 %v486, %v508
        %v517 = vadd.f32 %v487, %v509
        %s518 = sadd.s32 %s225, 72
        %s519 = scalar_lea.vmem %s179, %s518
        %v520 = vld [vmem:[%s519] sm:$0xff]
        %v521 = vld [vmem:[%s519 + $0x8] sm:$0xff]
        %v522 = vld [vmem:[%s519 + $0x10] sm:$0xff]
        %v523 = vld [vmem:[%s519 + $0x18] sm:$0xff]
        %v524 = vld [vmem:[%s519 + $0x20] sm:$0xff]
        %v525 = vld [vmem:[%s519 + $0x28] sm:$0xff]
        %v526 = vld [vmem:[%s519 + $0x30] sm:$0xff]
        %v527 = vld [vmem:[%s519 + $0x38] sm:$0xff]
        %v528 = vlaneseq
        %v529 = vshrl.u32 %v528, 7
        %v530 = vsub.s32 0, %v529
        %v531 = vrot.slane %v202, %v530
        %v532 = vmul.f32 %v531, %v520
        %v533 = vmul.f32 %v531, %v521
        %v534 = vmul.f32 %v531, %v522
        %v535 = vmul.f32 %v531, %v523
        %v536 = vmul.f32 %v531, %v524
        %v537 = vmul.f32 %v531, %v525
        %v538 = vmul.f32 %v531, %v526
        %v539 = vmul.f32 %v531, %v527
        %v540 = vadd.f32 %v510, %v532
        %v541 = vadd.f32 %v511, %v533
        %v542 = vadd.f32 %v512, %v534
        %v543 = vadd.f32 %v513, %v535
        %v544 = vadd.f32 %v514, %v536
        %v545 = vadd.f32 %v515, %v537
        %v546 = vadd.f32 %v516, %v538
        %v547 = vadd.f32 %v517, %v539
        %s548 = sadd.s32 %s225, 74
        %s549 = scalar_lea.vmem %s179, %s548
        %v550 = vld [vmem:[%s549] sm:$0xff]
        %v551 = vld [vmem:[%s549 + $0x8] sm:$0xff]
        %v552 = vld [vmem:[%s549 + $0x10] sm:$0xff]
        %v553 = vld [vmem:[%s549 + $0x18] sm:$0xff]
        %v554 = vld [vmem:[%s549 + $0x20] sm:$0xff]
        %v555 = vld [vmem:[%s549 + $0x28] sm:$0xff]
        %v556 = vld [vmem:[%s549 + $0x30] sm:$0xff]
        %v557 = vld [vmem:[%s549 + $0x38] sm:$0xff]
        %v558 = vlaneseq
        %v559 = vshrl.u32 %v558, 7
        %v560 = vsub.s32 0, %v559
        %v561 = vrot.slane %v203, %v560
        %v562 = vmul.f32 %v561, %v550
        %v563 = vmul.f32 %v561, %v551
        %v564 = vmul.f32 %v561, %v552
        %v565 = vmul.f32 %v561, %v553
        %v566 = vmul.f32 %v561, %v554
        %v567 = vmul.f32 %v561, %v555
        %v568 = vmul.f32 %v561, %v556
        %v569 = vmul.f32 %v561, %v557
        %v570 = vadd.f32 %v540, %v562
        %v571 = vadd.f32 %v541, %v563
        %v572 = vadd.f32 %v542, %v564
        %v573 = vadd.f32 %v543, %v565
        %v574 = vadd.f32 %v544, %v566
        %v575 = vadd.f32 %v545, %v567
        %v576 = vadd.f32 %v546, %v568
        %v577 = vadd.f32 %v547, %v569
        %s578 = sadd.s32 %s225, 118
        %s579 = scalar_lea.vmem %s179, %s578
        %v580 = vld [vmem:[%s579] sm:$0xff]
        %v581 = vld [vmem:[%s579 + $0x8] sm:$0xff]
        %v582 = vld [vmem:[%s579 + $0x10] sm:$0xff]
        %v583 = vld [vmem:[%s579 + $0x18] sm:$0xff]
        %v584 = vld [vmem:[%s579 + $0x20] sm:$0xff]
        %v585 = vld [vmem:[%s579 + $0x28] sm:$0xff]
        %v586 = vld [vmem:[%s579 + $0x30] sm:$0xff]
        %v587 = vld [vmem:[%s579 + $0x38] sm:$0xff]
        %v588 = vlaneseq
        %v589 = vshrl.u32 %v588, 7
        %v590 = vsub.s32 0, %v589
        %v591 = vrot.slane %v204, %v590
        %v592 = vmul.f32 %v591, %v580
        %v593 = vmul.f32 %v591, %v581
        %v594 = vmul.f32 %v591, %v582
        %v595 = vmul.f32 %v591, %v583
        %v596 = vmul.f32 %v591, %v584
        %v597 = vmul.f32 %v591, %v585
        %v598 = vmul.f32 %v591, %v586
        %v599 = vmul.f32 %v591, %v587
        %v600 = vadd.f32 %v570, %v592
        %v601 = vadd.f32 %v571, %v593
        %v602 = vadd.f32 %v572, %v594
        %v603 = vadd.f32 %v573, %v595
        %v604 = vadd.f32 %v574, %v596
        %v605 = vadd.f32 %v575, %v597
        %v606 = vadd.f32 %v576, %v598
        %v607 = vadd.f32 %v577, %v599
        %v608 = vlaneseq
        %v609 = vshrl.u32 %v608, 7
        %v610 = vsub.s32 0, %v609
        %v611 = vrot.slane %v205, %v610
        %v612 = vmul.f32 %v611, %v340
        %v613 = vmul.f32 %v611, %v341
        %v614 = vmul.f32 %v611, %v342
        %v615 = vmul.f32 %v611, %v343
        %v616 = vmul.f32 %v611, %v344
        %v617 = vmul.f32 %v611, %v345
        %v618 = vmul.f32 %v611, %v346
        %v619 = vmul.f32 %v611, %v347
        %v620 = vadd.f32 %v600, %v612
        %v621 = vadd.f32 %v601, %v613
        %v622 = vadd.f32 %v602, %v614
        %v623 = vadd.f32 %v603, %v615
        %v624 = vadd.f32 %v604, %v616
        %v625 = vadd.f32 %v605, %v617
        %v626 = vadd.f32 %v606, %v618
        %v627 = vadd.f32 %v607, %v619
        %s628 = sadd.s32 %s225, 122
        %s629 = scalar_lea.vmem %s179, %s628
        %v630 = vld [vmem:[%s629] sm:$0xff]
        %v631 = vld [vmem:[%s629 + $0x8] sm:$0xff]
        %v632 = vld [vmem:[%s629 + $0x10] sm:$0xff]
        %v633 = vld [vmem:[%s629 + $0x18] sm:$0xff]
        %v634 = vld [vmem:[%s629 + $0x20] sm:$0xff]
        %v635 = vld [vmem:[%s629 + $0x28] sm:$0xff]
        %v636 = vld [vmem:[%s629 + $0x30] sm:$0xff]
        %v637 = vld [vmem:[%s629 + $0x38] sm:$0xff]
        %v638 = vlaneseq
        %v639 = vshrl.u32 %v638, 7
        %v640 = vsub.s32 0, %v639
        %v641 = vrot.slane %v206, %v640
        %v642 = vmul.f32 %v641, %v630
        %v643 = vmul.f32 %v641, %v631
        %v644 = vmul.f32 %v641, %v632
        %v645 = vmul.f32 %v641, %v633
        %v646 = vmul.f32 %v641, %v634
        %v647 = vmul.f32 %v641, %v635
        %v648 = vmul.f32 %v641, %v636
        %v649 = vmul.f32 %v641, %v637
        %v650 = vadd.f32 %v620, %v642
        %v651 = vadd.f32 %v621, %v643
        %v652 = vadd.f32 %v622, %v644
        %v653 = vadd.f32 %v623, %v645
        %v654 = vadd.f32 %v624, %v646
        %v655 = vadd.f32 %v625, %v647
        %v656 = vadd.f32 %v626, %v648
        %v657 = vadd.f32 %v627, %v649
        %s658 = sadd.s32 %s225, 166
        %s659 = scalar_lea.vmem %s179, %s658
        %v660 = vld [vmem:[%s659] sm:$0xff]
        %v661 = vld [vmem:[%s659 + $0x8] sm:$0xff]
        %v662 = vld [vmem:[%s659 + $0x10] sm:$0xff]
        %v663 = vld [vmem:[%s659 + $0x18] sm:$0xff]
        %v664 = vld [vmem:[%s659 + $0x20] sm:$0xff]
        %v665 = vld [vmem:[%s659 + $0x28] sm:$0xff]
        %v666 = vld [vmem:[%s659 + $0x30] sm:$0xff]
        %v667 = vld [vmem:[%s659 + $0x38] sm:$0xff]
        %v668 = vlaneseq
        %v669 = vshrl.u32 %v668, 7
        %v670 = vsub.s32 0, %v669
        %v671 = vrot.slane %v207, %v670
        %v672 = vmul.f32 %v671, %v660
        %v673 = vmul.f32 %v671, %v661
        %v674 = vmul.f32 %v671, %v662
        %v675 = vmul.f32 %v671, %v663
        %v676 = vmul.f32 %v671, %v664
        %v677 = vmul.f32 %v671, %v665
        %v678 = vmul.f32 %v671, %v666
        %v679 = vmul.f32 %v671, %v667
        %v680 = vadd.f32 %v650, %v672
        %v681 = vadd.f32 %v651, %v673
        %v682 = vadd.f32 %v652, %v674
        %v683 = vadd.f32 %v653, %v675
        %v684 = vadd.f32 %v654, %v676
        %v685 = vadd.f32 %v655, %v677
        %v686 = vadd.f32 %v656, %v678
        %v687 = vadd.f32 %v657, %v679
        %s688 = sadd.s32 %s225, 168
        %s689 = scalar_lea.vmem %s179, %s688
        %v690 = vld [vmem:[%s689] sm:$0xff]
        %v691 = vld [vmem:[%s689 + $0x8] sm:$0xff]
        %v692 = vld [vmem:[%s689 + $0x10] sm:$0xff]
        %v693 = vld [vmem:[%s689 + $0x18] sm:$0xff]
        %v694 = vld [vmem:[%s689 + $0x20] sm:$0xff]
        %v695 = vld [vmem:[%s689 + $0x28] sm:$0xff]
        %v696 = vld [vmem:[%s689 + $0x30] sm:$0xff]
        %v697 = vld [vmem:[%s689 + $0x38] sm:$0xff]
        %v698 = vlaneseq
        %v699 = vshrl.u32 %v698, 7
        %v700 = vsub.s32 0, %v699
        %v701 = vrot.slane %v208, %v700
        %v702 = vmul.f32 %v701, %v690
        %v703 = vmul.f32 %v701, %v691
        %v704 = vmul.f32 %v701, %v692
        %v705 = vmul.f32 %v701, %v693
        %v706 = vmul.f32 %v701, %v694
        %v707 = vmul.f32 %v701, %v695
        %v708 = vmul.f32 %v701, %v696
        %v709 = vmul.f32 %v701, %v697
        %v710 = vadd.f32 %v680, %v702
        %v711 = vadd.f32 %v681, %v703
        %v712 = vadd.f32 %v682, %v704
        %v713 = vadd.f32 %v683, %v705
        %v714 = vadd.f32 %v684, %v706
        %v715 = vadd.f32 %v685, %v707
        %v716 = vadd.f32 %v686, %v708
        %v717 = vadd.f32 %v687, %v709
        %s718 = sadd.s32 %s225, 170
        %s719 = scalar_lea.vmem %s179, %s718
        %v720 = vld [vmem:[%s719] sm:$0xff]
        %v721 = vld [vmem:[%s719 + $0x8] sm:$0xff]
        %v722 = vld [vmem:[%s719 + $0x10] sm:$0xff]
        %v723 = vld [vmem:[%s719 + $0x18] sm:$0xff]
        %v724 = vld [vmem:[%s719 + $0x20] sm:$0xff]
        %v725 = vld [vmem:[%s719 + $0x28] sm:$0xff]
        %v726 = vld [vmem:[%s719 + $0x30] sm:$0xff]
        %v727 = vld [vmem:[%s719 + $0x38] sm:$0xff]
        %v728 = vlaneseq
        %v729 = vshrl.u32 %v728, 7
        %v730 = vsub.s32 0, %v729
        %v731 = vrot.slane %v209, %v730
        %v732 = vmul.f32 %v731, %v720
        %v733 = vmul.f32 %v731, %v721
        %v734 = vmul.f32 %v731, %v722
        %v735 = vmul.f32 %v731, %v723
        %v736 = vmul.f32 %v731, %v724
        %v737 = vmul.f32 %v731, %v725
        %v738 = vmul.f32 %v731, %v726
        %v739 = vmul.f32 %v731, %v727
        %v740 = vadd.f32 %v710, %v732
        %v741 = vadd.f32 %v711, %v733
        %v742 = vadd.f32 %v712, %v734
        %v743 = vadd.f32 %v713, %v735
        %v744 = vadd.f32 %v714, %v736
        %v745 = vadd.f32 %v715, %v737
        %v746 = vadd.f32 %v716, %v738
        %v747 = vadd.f32 %v717, %v739
        %s748 = sadd.s32 %s225, 20
        %s749 = scalar_lea.vmem %s179, %s748
        %v750 = vld [vmem:[%s749] sm:$0xff]
        %v751 = vld [vmem:[%s749 + $0x8] sm:$0xff]
        %v752 = vld [vmem:[%s749 + $0x10] sm:$0xff]
        %v753 = vld [vmem:[%s749 + $0x18] sm:$0xff]
        %v754 = vld [vmem:[%s749 + $0x20] sm:$0xff]
        %v755 = vld [vmem:[%s749 + $0x28] sm:$0xff]
        %v756 = vld [vmem:[%s749 + $0x30] sm:$0xff]
        %v757 = vld [vmem:[%s749 + $0x38] sm:$0xff]
        %v758 = vlaneseq
        %v759 = vshrl.u32 %v758, 7
        %v760 = vsub.s32 0, %v759
        %v761 = vrot.slane %v210, %v760
        %v762 = vmul.f32 %v761, %v750
        %v763 = vmul.f32 %v761, %v751
        %v764 = vmul.f32 %v761, %v752
        %v765 = vmul.f32 %v761, %v753
        %v766 = vmul.f32 %v761, %v754
        %v767 = vmul.f32 %v761, %v755
        %v768 = vmul.f32 %v761, %v756
        %v769 = vmul.f32 %v761, %v757
        %v770 = vadd.f32 %v740, %v762
        %v771 = vadd.f32 %v741, %v763
        %v772 = vadd.f32 %v742, %v764
        %v773 = vadd.f32 %v743, %v765
        %v774 = vadd.f32 %v744, %v766
        %v775 = vadd.f32 %v745, %v767
        %v776 = vadd.f32 %v746, %v768
        %v777 = vadd.f32 %v747, %v769
        %s778 = sadd.s32 %s225, 24
        %s779 = scalar_lea.vmem %s179, %s778
        %v780 = vld [vmem:[%s779] sm:$0xff]
        %v781 = vld [vmem:[%s779 + $0x8] sm:$0xff]
        %v782 = vld [vmem:[%s779 + $0x10] sm:$0xff]
        %v783 = vld [vmem:[%s779 + $0x18] sm:$0xff]
        %v784 = vld [vmem:[%s779 + $0x20] sm:$0xff]
        %v785 = vld [vmem:[%s779 + $0x28] sm:$0xff]
        %v786 = vld [vmem:[%s779 + $0x30] sm:$0xff]
        %v787 = vld [vmem:[%s779 + $0x38] sm:$0xff]
        %v788 = vlaneseq
        %v789 = vshrl.u32 %v788, 7
        %v790 = vsub.s32 0, %v789
        %v791 = vrot.slane %v211, %v790
        %v792 = vmul.f32 %v791, %v780
        %v793 = vmul.f32 %v791, %v781
        %v794 = vmul.f32 %v791, %v782
        %v795 = vmul.f32 %v791, %v783
        %v796 = vmul.f32 %v791, %v784
        %v797 = vmul.f32 %v791, %v785
        %v798 = vmul.f32 %v791, %v786
        %v799 = vmul.f32 %v791, %v787
        %v800 = vadd.f32 %v770, %v792
        %v801 = vadd.f32 %v771, %v793
        %v802 = vadd.f32 %v772, %v794
        %v803 = vadd.f32 %v773, %v795
        %v804 = vadd.f32 %v774, %v796
        %v805 = vadd.f32 %v775, %v797
        %v806 = vadd.f32 %v776, %v798
        %v807 = vadd.f32 %v777, %v799
        %s808 = sadd.s32 %s225, 28
        %s809 = scalar_lea.vmem %s179, %s808
        %v810 = vld [vmem:[%s809] sm:$0xff]
        %v811 = vld [vmem:[%s809 + $0x8] sm:$0xff]
        %v812 = vld [vmem:[%s809 + $0x10] sm:$0xff]
        %v813 = vld [vmem:[%s809 + $0x18] sm:$0xff]
        %v814 = vld [vmem:[%s809 + $0x20] sm:$0xff]
        %v815 = vld [vmem:[%s809 + $0x28] sm:$0xff]
        %v816 = vld [vmem:[%s809 + $0x30] sm:$0xff]
        %v817 = vld [vmem:[%s809 + $0x38] sm:$0xff]
        %v818 = vlaneseq
        %v819 = vshrl.u32 %v818, 7
        %v820 = vsub.s32 0, %v819
        %v821 = vrot.slane %v212, %v820
        %v822 = vmul.f32 %v821, %v810
        %v823 = vmul.f32 %v821, %v811
        %v824 = vmul.f32 %v821, %v812
        %v825 = vmul.f32 %v821, %v813
        %v826 = vmul.f32 %v821, %v814
        %v827 = vmul.f32 %v821, %v815
        %v828 = vmul.f32 %v821, %v816
        %v829 = vmul.f32 %v821, %v817
        %v830 = vadd.f32 %v800, %v822
        %v831 = vadd.f32 %v801, %v823
        %v832 = vadd.f32 %v802, %v824
        %v833 = vadd.f32 %v803, %v825
        %v834 = vadd.f32 %v804, %v826
        %v835 = vadd.f32 %v805, %v827
        %v836 = vadd.f32 %v806, %v828
        %v837 = vadd.f32 %v807, %v829
        %s838 = sadd.s32 %s225, 116
        %s839 = scalar_lea.vmem %s179, %s838
        %v840 = vld [vmem:[%s839] sm:$0xff]
        %v841 = vld [vmem:[%s839 + $0x8] sm:$0xff]
        %v842 = vld [vmem:[%s839 + $0x10] sm:$0xff]
        %v843 = vld [vmem:[%s839 + $0x18] sm:$0xff]
        %v844 = vld [vmem:[%s839 + $0x20] sm:$0xff]
        %v845 = vld [vmem:[%s839 + $0x28] sm:$0xff]
        %v846 = vld [vmem:[%s839 + $0x30] sm:$0xff]
        %v847 = vld [vmem:[%s839 + $0x38] sm:$0xff]
        %v848 = vlaneseq
        %v849 = vshrl.u32 %v848, 7
        %v850 = vsub.s32 0, %v849
        %v851 = vrot.slane %v213, %v850
        %v852 = vmul.f32 %v851, %v840
        %v853 = vmul.f32 %v851, %v841
        %v854 = vmul.f32 %v851, %v842
        %v855 = vmul.f32 %v851, %v843
        %v856 = vmul.f32 %v851, %v844
        %v857 = vmul.f32 %v851, %v845
        %v858 = vmul.f32 %v851, %v846
        %v859 = vmul.f32 %v851, %v847
        %v860 = vadd.f32 %v830, %v852
        %v861 = vadd.f32 %v831, %v853
        %v862 = vadd.f32 %v832, %v854
        %v863 = vadd.f32 %v833, %v855
        %v864 = vadd.f32 %v834, %v856
        %v865 = vadd.f32 %v835, %v857
        %v866 = vadd.f32 %v836, %v858
        %v867 = vadd.f32 %v837, %v859
        %v868 = vlaneseq
        %v869 = vshrl.u32 %v868, 7
        %v870 = vsub.s32 0, %v869
        %v871 = vrot.slane %v214, %v870
        %v872 = vmul.f32 %v871, %v340
        %v873 = vmul.f32 %v871, %v341
        %v874 = vmul.f32 %v871, %v342
        %v875 = vmul.f32 %v871, %v343
        %v876 = vmul.f32 %v871, %v344
        %v877 = vmul.f32 %v871, %v345
        %v878 = vmul.f32 %v871, %v346
        %v879 = vmul.f32 %v871, %v347
        %v880 = vadd.f32 %v860, %v872
        %v881 = vadd.f32 %v861, %v873
        %v882 = vadd.f32 %v862, %v874
        %v883 = vadd.f32 %v863, %v875
        %v884 = vadd.f32 %v864, %v876
        %v885 = vadd.f32 %v865, %v877
        %v886 = vadd.f32 %v866, %v878
        %v887 = vadd.f32 %v867, %v879
        %s888 = sadd.s32 %s225, 124
        %s889 = scalar_lea.vmem %s179, %s888
        %v890 = vld [vmem:[%s889] sm:$0xff]
        %v891 = vld [vmem:[%s889 + $0x8] sm:$0xff]
        %v892 = vld [vmem:[%s889 + $0x10] sm:$0xff]
        %v893 = vld [vmem:[%s889 + $0x18] sm:$0xff]
        %v894 = vld [vmem:[%s889 + $0x20] sm:$0xff]
        %v895 = vld [vmem:[%s889 + $0x28] sm:$0xff]
        %v896 = vld [vmem:[%s889 + $0x30] sm:$0xff]
        %v897 = vld [vmem:[%s889 + $0x38] sm:$0xff]
        %v898 = vlaneseq
        %v899 = vshrl.u32 %v898, 7
        %v900 = vsub.s32 0, %v899
        %v901 = vrot.slane %v215, %v900
        %v902 = vmul.f32 %v901, %v890
        %v903 = vmul.f32 %v901, %v891
        %v904 = vmul.f32 %v901, %v892
        %v905 = vmul.f32 %v901, %v893
        %v906 = vmul.f32 %v901, %v894
        %v907 = vmul.f32 %v901, %v895
        %v908 = vmul.f32 %v901, %v896
        %v909 = vmul.f32 %v901, %v897
        %v910 = vadd.f32 %v880, %v902
        %v911 = vadd.f32 %v881, %v903
        %v912 = vadd.f32 %v882, %v904
        %v913 = vadd.f32 %v883, %v905
        %v914 = vadd.f32 %v884, %v906
        %v915 = vadd.f32 %v885, %v907
        %v916 = vadd.f32 %v886, %v908
        %v917 = vadd.f32 %v887, %v909
        %s918 = sadd.s32 %s225, 212
        %s919 = scalar_lea.vmem %s179, %s918
        %v920 = vld [vmem:[%s919] sm:$0xff]
        %v921 = vld [vmem:[%s919 + $0x8] sm:$0xff]
        %v922 = vld [vmem:[%s919 + $0x10] sm:$0xff]
        %v923 = vld [vmem:[%s919 + $0x18] sm:$0xff]
        %v924 = vld [vmem:[%s919 + $0x20] sm:$0xff]
        %v925 = vld [vmem:[%s919 + $0x28] sm:$0xff]
        %v926 = vld [vmem:[%s919 + $0x30] sm:$0xff]
        %v927 = vld [vmem:[%s919 + $0x38] sm:$0xff]
        %v928 = vlaneseq
        %v929 = vshrl.u32 %v928, 7
        %v930 = vsub.s32 0, %v929
        %v931 = vrot.slane %v216, %v930
        %v932 = vmul.f32 %v931, %v920
        %v933 = vmul.f32 %v931, %v921
        %v934 = vmul.f32 %v931, %v922
        %v935 = vmul.f32 %v931, %v923
        %v936 = vmul.f32 %v931, %v924
        %v937 = vmul.f32 %v931, %v925
        %v938 = vmul.f32 %v931, %v926
        %v939 = vmul.f32 %v931, %v927
        %v940 = vadd.f32 %v910, %v932
        %v941 = vadd.f32 %v911, %v933
        %v942 = vadd.f32 %v912, %v934
        %v943 = vadd.f32 %v913, %v935
        %v944 = vadd.f32 %v914, %v936
        %v945 = vadd.f32 %v915, %v937
        %v946 = vadd.f32 %v916, %v938
        %v947 = vadd.f32 %v917, %v939
        %s948 = sadd.s32 %s225, 216
        %s949 = scalar_lea.vmem %s179, %s948
        %v950 = vld [vmem:[%s949] sm:$0xff]
        %v951 = vld [vmem:[%s949 + $0x8] sm:$0xff]
        %v952 = vld [vmem:[%s949 + $0x10] sm:$0xff]
        %v953 = vld [vmem:[%s949 + $0x18] sm:$0xff]
        %v954 = vld [vmem:[%s949 + $0x20] sm:$0xff]
        %v955 = vld [vmem:[%s949 + $0x28] sm:$0xff]
        %v956 = vld [vmem:[%s949 + $0x30] sm:$0xff]
        %v957 = vld [vmem:[%s949 + $0x38] sm:$0xff]
        %v958 = vlaneseq
        %v959 = vshrl.u32 %v958, 7
        %v960 = vsub.s32 0, %v959
        %v961 = vrot.slane %v217, %v960
        %v962 = vmul.f32 %v961, %v950
        %v963 = vmul.f32 %v961, %v951
        %v964 = vmul.f32 %v961, %v952
        %v965 = vmul.f32 %v961, %v953
        %v966 = vmul.f32 %v961, %v954
        %v967 = vmul.f32 %v961, %v955
        %v968 = vmul.f32 %v961, %v956
        %v969 = vmul.f32 %v961, %v957
        %v970 = vadd.f32 %v940, %v962
        %v971 = vadd.f32 %v941, %v963
        %v972 = vadd.f32 %v942, %v964
        %v973 = vadd.f32 %v943, %v965
        %v974 = vadd.f32 %v944, %v966
        %v975 = vadd.f32 %v945, %v967
        %v976 = vadd.f32 %v946, %v968
        %v977 = vadd.f32 %v947, %v969
        %s978 = sadd.s32 %s225, 220
        %s979 = scalar_lea.vmem %s179, %s978
        %v980 = vld [vmem:[%s979] sm:$0xff]
        %v981 = vld [vmem:[%s979 + $0x8] sm:$0xff]
        %v982 = vld [vmem:[%s979 + $0x10] sm:$0xff]
        %v983 = vld [vmem:[%s979 + $0x18] sm:$0xff]
        %v984 = vld [vmem:[%s979 + $0x20] sm:$0xff]
        %v985 = vld [vmem:[%s979 + $0x28] sm:$0xff]
        %v986 = vld [vmem:[%s979 + $0x30] sm:$0xff]
        %v987 = vld [vmem:[%s979 + $0x38] sm:$0xff]
        %v988 = vlaneseq
        %v989 = vshrl.u32 %v988, 7
        %v990 = vsub.s32 0, %v989
        %v991 = vrot.slane %v218, %v990
        %v992 = vmul.f32 %v991, %v980
        %v993 = vmul.f32 %v991, %v981
        %v994 = vmul.f32 %v991, %v982
        %v995 = vmul.f32 %v991, %v983
        %v996 = vmul.f32 %v991, %v984
        %v997 = vmul.f32 %v991, %v985
        %v998 = vmul.f32 %v991, %v986
        %v999 = vmul.f32 %v991, %v987
        %v1000 = vadd.f32 %v970, %v992
        %v1001 = vadd.f32 %v971, %v993
        %v1002 = vadd.f32 %v972, %v994
        %v1003 = vadd.f32 %v973, %v995
        %v1004 = vadd.f32 %v974, %v996
        %v1005 = vadd.f32 %v975, %v997
        %v1006 = vadd.f32 %v976, %v998
        %v1007 = vadd.f32 %v977, %v999
        %s1008 = scalar_lea.vmem %s191, %s225
        %vm1009 = vcmask 261120
        %1010 = vst.msk [vmem:[%s1008] sm:$0xff] %vm1009, %v1000
        %1011 = vst.msk [vmem:[%s1008 + $0x8] sm:$0xff] %vm1009, %v1001
        %1012 = vst.msk [vmem:[%s1008 + $0x10] sm:$0xff] %vm1009, %v1002
        %1013 = vst.msk [vmem:[%s1008 + $0x18] sm:$0xff] %vm1009, %v1003
        %1014 = vst.msk [vmem:[%s1008 + $0x20] sm:$0xff] %vm1009, %v1004
        %1015 = vst.msk [vmem:[%s1008 + $0x28] sm:$0xff] %vm1009, %v1005
        %1016 = vst.msk [vmem:[%s1008 + $0x30] sm:$0xff] %vm1009, %v1006
        %1017 = vst.msk [vmem:[%s1008 + $0x38] sm:$0xff] %vm1009, %v1007
      $region33: #{multi_scale_dilated_conv.1} parent=27 // loop_footer
        %s224 = sadd.s32 1, %s220
      $region34: #{multi_scale_dilated_conv.1} parent=27 // loop_footer_branch
        %219 = sbr.rel target = $region30
      $region35: #{multi_scale_dilated_conv.1} parent=27 // loop_exit
        _
      %p1018 = scmp.lt.s32.totalorder %s17, 1
      %s1019 = scalar_select %p1018, %s17, 1
      %p1020 = scmp.lt.s32.totalorder %s18, 0
      %s1021 = scalar_select %p1020, %s18, 0
      %s1022 = smul.addr %s1019, 48
      %s1023 = sadd.s32 %s1021, %s1022
      %s1024 = smul.addr %s1023, 8
      %s1025 = scalar_lea.vmem %s2, %s1024
      // Predicated region
      $region36: #{multi_scale_dilated_conv.1} parent=27 // pred_check
        %p1026 = pneg %p99
      $region37: #{multi_scale_dilated_conv.1} parent=27 // pred_check_branch
        %1028 = sbr.rel (%p1026) target = $region39
      $region38: #{multi_scale_dilated_conv.1} parent=27 // pred_region
        _
      $region39: #{multi_scale_dilated_conv.1} parent=27 // pred_fallthru
        _
    $region28: #{multi_scale_dilated_conv.1} parent=5 // pred_fallthru
      _
    %p1029 = scmp.le.s32.totalorder 2, %s8
    // Predicated region
    $region40: #{multi_scale_dilated_conv.1} parent=5 // pred_check
      %p1030 = pneg %p1029
    $region41: #{multi_scale_dilated_conv.1} parent=5 // pred_check_branch
      %1032 = sbr.rel (%p1030) target = $region43
    $region42: #{multi_scale_dilated_conv.1} parent=5 // pred_region
      %s1033 = ssub.s32 %s8, 2
      // Predicated region
      $region44: #{multi_scale_dilated_conv.1} parent=42 // pred_check
        %p1034 = pneg %p105
      $region45: #{multi_scale_dilated_conv.1} parent=42 // pred_check_branch
        %1036 = sbr.rel (%p1034) target = $region47
      $region46: #{multi_scale_dilated_conv.1} parent=42 // pred_region
        %p1037 = scmp.lt.s32.totalorder %s19, 1
        %s1038 = scalar_select %p1037, %s19, 1
        %p1039 = scmp.lt.s32.totalorder %s20, 0
        %s1040 = scalar_select %p1039, %s20, 0
        %s1041 = smul.addr %s1038, 48
        %s1042 = sadd.s32 %s1040, %s1041
        %s1043 = smul.addr %s1042, 8
        %s1044 = scalar_lea.vmem %s2, %s1043
      $region47: #{multi_scale_dilated_conv.1} parent=42 // pred_fallthru
        _
    $region43: #{multi_scale_dilated_conv.1} parent=5 // pred_fallthru
      _
  $region6: #{multi_scale_dilated_conv.1} parent=0 // loop_footer
    %s12 = sadd.s32 1, %s8
  $region7: #{multi_scale_dilated_conv.1} parent=0 // loop_footer_branch
    %7 = sbr.rel target = $region3
  $region8: #{multi_scale_dilated_conv.1} parent=0 // loop_exit
    _

</llo_original>
